<compile_context>
chip_gen: v7x
topology: tpu7x:2x2x1
jax: 0.10.0
libtpu: 0.0.40
codegen_flags: <defaults>
</compile_context>

<pallas_src>
import functools

import numpy as np
import jax
import jax.numpy as jnp
from jax.experimental import pallas as pl
from jax.experimental.pallas import tpu as pltpu


# ----------------------------------------------------------------------------
# Diffusion schedule (host-side, plain numpy)
# ----------------------------------------------------------------------------
def make_beta_schedule(schedule="linear", n_timestep=1000,
                       linear_start=1e-4, linear_end=2e-2):
    assert schedule == "linear"
    betas = np.linspace(linear_start ** 0.5, linear_end ** 0.5,
                        n_timestep, dtype=np.float64) ** 2
    return betas


# ----------------------------------------------------------------------------
# Pallas kernel: whole batch in one grid step, batch folded into matmul M dim
# ----------------------------------------------------------------------------
def _diffusion_loss_kernel(sa_ref, sb_ref, x0_ref, xp_ref, fc_ref, nz_ref,
                           wfc_ref, w1_ref, b1_ref, w2_ref, b2_ref,
                           out_ref, *, batch, horizon):
    T = horizon
    nz = nz_ref[...]                                           # (B*T, D) f32

    # ---- q_sample (forward diffusion), whole flattened batch at once ------
    #   x_noisy = sqrt(ac[t]) * x0 + sqrt(1 - ac[t]) * eps
    x_noisy = sa_ref[...] * x0_ref[...] + sb_ref[...] * nz     # (B*T, D) f32

    # ---- denoiser: fused [face|cond] projection + 2-layer MLP (bf16 MXU) --
    fc_proj = jnp.dot(fc_ref[...], wfc_ref[...],
                      preferred_element_type=jnp.float32)      # (B*T, D) f32
    h = x_noisy + xp_ref[...] + fc_proj
    h = jnp.dot(h.astype(jnp.bfloat16), w1_ref[...],
                preferred_element_type=jnp.float32) + b1_ref[...]
    h = jnp.maximum(h, 0.0)
    model_out = jnp.dot(h.astype(jnp.bfloat16), w2_ref[...],
                        preferred_element_type=jnp.float32) + b2_ref[...]

    # predict_epsilon = True  ->  target is the noise
    target = nz
    abs_diff = jnp.abs(model_out - target)                     # (B*T, D) f32

    # ---- per-batch L1 + temporal-velocity L1 (p2 weighting in the wrapper) -
    # Static unroll over the (tiny) batch; slices are sublane-aligned (T = 8).
    for i in range(batch):
        lo = i * T
        l_i = jnp.mean(abs_diff[lo:lo + T, :])                 # scalar
        mo = model_out[lo:lo + T, :]
        tg = target[lo:lo + T, :]
        vl_i = jnp.mean(
            jnp.abs((mo[1:, :] - mo[:-1, :]) - (tg[1:, :] - tg[:-1, :])))
        # single lane-contiguous (1, 2*B) output block; columns [0:B] = loss,
        # [B:2B] = velocity loss
        out_ref[0:1, i:i + 1] = jnp.full((1, 1), l_i, dtype=jnp.float32)
        out_ref[0:1, batch + i:batch + i + 1] = jnp.full((1, 1), vl_i,
                                                         dtype=jnp.float32)


# ----------------------------------------------------------------------------
# GaussianDiffusion wrapper (buffers + params + forward glue)
# ----------------------------------------------------------------------------
class GaussianDiffusionPallas:
    def __init__(self, horizon, repr_dim, face_dim, cond_dim, hidden_dim,
                 n_timestep=1000, schedule="linear", loss_type="l1",
                 predict_epsilon=True, guidance_weight=3, use_p2=False,
                 cond_drop_prob=0.2, key=jax.random.PRNGKey(1234)):
        self.horizon = horizon
        self.transition_dim = repr_dim
        self.n_timestep = int(n_timestep)
        self.predict_epsilon = predict_epsilon
        self.guidance_weight = guidance_weight
        self.cond_drop_prob = cond_drop_prob
        self.face_dim = face_dim
        self.cond_dim = cond_dim
        self.hidden_dim = hidden_dim
        assert loss_type == "l1"  # default in the PyTorch module

        betas = make_beta_schedule(schedule, n_timestep)
        alphas = 1.0 - betas
        alphas_cumprod = np.cumprod(alphas, axis=0)
        self.betas = jnp.asarray(betas, jnp.float32)
        self.sqrt_alphas_cumprod = jnp.asarray(np.sqrt(alphas_cumprod),
                                               jnp.float32)
        self.sqrt_one_minus_alphas_cumprod = jnp.asarray(
            np.sqrt(1.0 - alphas_cumprod), jnp.float32)
        p2_gamma = 0.5 if use_p2 else 0.0
        self.p2_loss_weight = jnp.asarray(
            (1.0 + alphas_cumprod / (1.0 - alphas_cumprod)) ** (-p2_gamma),
            jnp.float32)

        # deterministic synthetic denoiser params (bf16 matmul weights,
        # f32 biases).  TODO(synk): real AToM denoiser transformer not modeled.
        ks = jax.random.split(key, 6)
        s = 0.1
        wc = s * jax.random.normal(ks[0], (cond_dim, repr_dim), jnp.float32)
        wf = s * jax.random.normal(ks[1], (face_dim, repr_dim), jnp.float32)
        # fused [face | cond] projection weight (kills the M=1 cond matmul)
        self.w_fc = jnp.concatenate([wf, wc], axis=0).astype(jnp.bfloat16)
        self.w1 = (s * jax.random.normal(ks[2], (repr_dim, hidden_dim),
                                         jnp.float32)).astype(jnp.bfloat16)
        self.b1 = s * jax.random.normal(ks[3], (1, hidden_dim), jnp.float32)
        self.w2 = (s * jax.random.normal(ks[4], (hidden_dim, repr_dim),
                                         jnp.float32)).astype(jnp.bfloat16)
        self.b2 = s * jax.random.normal(ks[5], (1, repr_dim), jnp.float32)

    # ---- the Pallas-backed p_losses ---------------------------------------
    def _p_losses(self, x_start, x_pos, face, cond, t, noise):
        B, T, D = x_start.shape
        assert T >= 2, "velocity loss needs horizon >= 2"
        Fd = face.shape[-1]
        C = cond.shape[-1]
        FC = Fd + C
        H = self.hidden_dim
        BT = B * T

        sa = jnp.take(self.sqrt_alphas_cumprod, t)          # (B,)
        sb = jnp.take(self.sqrt_one_minus_alphas_cumprod, t)
        p2 = jnp.take(self.p2_loss_weight, t)                # (B,)

        # ----- wrapper-side layout plumbing (free XLA reshapes/concats) -----
        sa_rows = jnp.repeat(sa, T).reshape(BT, 1)           # per-row coeffs
        sb_rows = jnp.repeat(sb, T).reshape(BT, 1)
        x0_flat = x_start.reshape(BT, D)
        xp_flat = x_pos.reshape(BT, D)
        nz_flat = noise.reshape(BT, D)
        cond_b = jnp.broadcast_to(cond, (B, T, C))
        fc_flat = jnp.concatenate([face, cond_b], axis=-1).reshape(
            BT, FC).astype(jnp.bfloat16)

        kernel = functools.partial(_diffusion_loss_kernel, batch=B, horizon=T)

        full2d = lambda r, c: pl.BlockSpec((r, c), lambda i: (0, 0))

        flops = 2 * BT * FC * D + 4 * BT * D * H + 12 * BT * D
        bytes_accessed = (
            4 * (sa_rows.size + sb_rows.size + x0_flat.size + xp_flat.size
                 + nz_flat.size + self.b1.size + self.b2.size + 2 * B)
            + 2 * (fc_flat.size + self.w_fc.size + self.w1.size
                   + self.w2.size))
        cost = pl.CostEstimate(flops=flops, transcendentals=0,
                               bytes_accessed=bytes_accessed)

        out = pl.pallas_call(
            kernel,
            out_shape=jax.ShapeDtypeStruct((1, 2 * B), jnp.float32),
            grid=(1,),
            in_specs=[
                full2d(BT, 1),      # sqrt_alphas_cumprod[t], per row
                full2d(BT, 1),      # sqrt_one_minus_alphas_cumprod[t], per row
                full2d(BT, D),      # x_start (flattened batch)
                full2d(BT, D),      # x_pos
                full2d(BT, FC),     # [face | cond]  (bf16)
                full2d(BT, D),      # noise
                full2d(FC, D),      # fused projection weight (bf16)
                full2d(D, H),       # w1 (bf16)
                full2d(1, H),       # b1 (f32)
                full2d(H, D),       # w2 (bf16)
                full2d(1, D),       # b2 (f32)
            ],
            out_specs=pl.BlockSpec((1, 2 * B), lambda i: (0, 0)),
            compiler_params=pltpu.CompilerParams(
                dimension_semantics=("arbitrary",)),
            cost_estimate=cost,
        )(sa_rows, sb_rows, x0_flat, xp_flat, fc_flat, nz_flat,
          self.w_fc, self.w1, self.b1, self.w2, self.b2)

        loss_pb = out[0, :B] * p2          # p2 weighting of B scalars = glue
        vloss_pb = out[0, B:] * p2
        losses = (7.5 * jnp.mean(loss_pb), 1.5 * jnp.mean(vloss_pb))
        return losses[0] + losses[1], losses

    # ---- forward == loss == p_losses (matching the PyTorch arg plumbing) --
    def forward(self, x_pos, x, face, cond, key, t_override=None):
        # PyTorch: forward(x_pos, x, ...) -> loss(x, x_pos, ...) so the FIRST
        # argument is the diffusion target x_start; the second feeds the model.
        x_start, model_pos_input = x_pos, x
        B = x_start.shape[0]
        k_t, k_noise = jax.random.split(key)
        if t_override is None:
            t = jax.random.randint(k_t, (B,), 0, self.n_timestep, jnp.int32)
        else:
            t = jnp.full((B,), int(t_override), jnp.int32)
        noise = jax.random.normal(k_noise, x_start.shape, jnp.float32)
        return self._p_losses(x_start, model_pos_input, face, cond, t, noise)

    # ---- pure-JAX reference (for sanity check) -----------------------------
    def reference(self, x_pos, x, face, cond, t, noise):
        x_start, model_pos_input = x_pos, x
        B, T, D = x_start.shape
        C = cond.shape[-1]
        sa = jnp.take(self.sqrt_alphas_cumprod, t)[:, None, None]
        sb = jnp.take(self.sqrt_one_minus_alphas_cumprod, t)[:, None, None]
        p2 = jnp.take(self.p2_loss_weight, t)
        x_noisy = sa * x_start + sb * noise

        bf16r = lambda v: v.astype(jnp.bfloat16).astype(jnp.float32)
        w_fc = self.w_fc.astype(jnp.float32)
        w1 = self.w1.astype(jnp.float32)
        w2 = self.w2.astype(jnp.float32)

        fc = jnp.concatenate([face, jnp.broadcast_to(cond, (B, T, C))],
                             axis=-1)
        fc_proj = jnp.einsum("btf,fd->btd", bf16r(fc), w_fc)
        h = x_noisy + model_pos_input + fc_proj
        h = jnp.maximum(jnp.einsum("btd,dh->bth", bf16r(h), w1) + self.b1, 0.0)
        model_out = jnp.einsum("bth,hd->btd", bf16r(h), w2) + self.b2

        target = noise
        loss = jnp.mean(jnp.abs(model_out - target), axis=(1, 2)) * p2
        tv = target[:, 1:] - target[:, :-1]
        mv = model_out[:, 1:] - model_out[:, :-1]
        vloss = jnp.mean(jnp.abs(mv - tv), axis=(1, 2)) * p2
        losses = (7.5 * jnp.mean(loss), 1.5 * jnp.mean(vloss))
        return losses[0] + losses[1], losses


# ----------------------------------------------------------------------------
if __name__ == "__main__":
    B, T, D = 2, 8, 32          # batch, horizon, repr_dim
    Fd, C, H = 16, 32, 32       # face feat dim, cond dim, denoiser hidden

    gd = GaussianDiffusionPallas(horizon=T, repr_dim=D, face_dim=Fd,
                                 cond_dim=C, hidden_dim=H, n_timestep=1000)

    key = jax.random.PRNGKey(0)
    k1, k2, k3, k4, k_fwd = jax.random.split(key, 5)
    x_pos = jax.random.normal(k1, (B, T, D), jnp.float32)   # diffusion target
    x = jax.random.normal(k2, (B, T, D), jnp.float32)       # model pos input
    face = jax.random.normal(k3, (B, T, Fd), jnp.float32)
    cond = jax.random.normal(k4, (B, 1, C), jnp.float32)

    total, (l, vl) = gd.forward(x_pos, x, face, cond, k_fwd, t_override=500)
    total = jax.block_until_ready(total)

    # sanity check against pure-JAX reference (same t / noise path)
    kt, kn = jax.random.split(k_fwd)
    t = jnp.full((B,), 500, jnp.int32)
    noise = jax.random.normal(kn, (B, T, D), jnp.float32)
    ref_total, _ = gd.reference(x_pos, x, face, cond, t, noise)
    np.testing.assert_allclose(np.asarray(total), np.asarray(ref_total),
                               rtol=2e-2, atol=2e-2)

    print("KERNEL_OK")
</pallas_src>

<mosaic_0001>
module attributes {stable_mosaic.version = 11 : i64} {
  func.func @_diffusion_loss_kernel(%arg0: i32, %arg1: memref<16x1xf32, #tpu.memory_space<vmem>>, %arg2: memref<16x1xf32, #tpu.memory_space<vmem>>, %arg3: memref<16x32xf32, #tpu.memory_space<vmem>>, %arg4: memref<16x32xf32, #tpu.memory_space<vmem>>, %arg5: memref<16x48xbf16, #tpu.memory_space<vmem>>, %arg6: memref<16x32xf32, #tpu.memory_space<vmem>>, %arg7: memref<48x32xbf16, #tpu.memory_space<vmem>>, %arg8: memref<32x32xbf16, #tpu.memory_space<vmem>>, %arg9: memref<1x32xf32, #tpu.memory_space<vmem>>, %arg10: memref<32x32xbf16, #tpu.memory_space<vmem>>, %arg11: memref<1x32xf32, #tpu.memory_space<vmem>>, %arg12: memref<1x4xf32, #tpu.memory_space<vmem>>) attributes {dimension_semantics = [#tpu.dimension_semantics<arbitrary>], iteration_bounds = array<i64: 1>, scalar_prefetch = 0 : i64, scratch_operands = 0 : i64, tpu.core_type = #tpu.core_type<tc>, window_params = [{pipeline_mode = #tpu.pipeline_mode<synchronous>, transform_indices = @transform_0, window_bounds = array<i64: 16, 1>}, {pipeline_mode = #tpu.pipeline_mode<synchronous>, transform_indices = @transform_1, window_bounds = array<i64: 16, 1>}, {pipeline_mode = #tpu.pipeline_mode<synchronous>, transform_indices = @transform_2, window_bounds = array<i64: 16, 32>}, {pipeline_mode = #tpu.pipeline_mode<synchronous>, transform_indices = @transform_3, window_bounds = array<i64: 16, 32>}, {pipeline_mode = #tpu.pipeline_mode<synchronous>, transform_indices = @transform_4, window_bounds = array<i64: 16, 48>}, {pipeline_mode = #tpu.pipeline_mode<synchronous>, transform_indices = @transform_5, window_bounds = array<i64: 16, 32>}, {pipeline_mode = #tpu.pipeline_mode<synchronous>, transform_indices = @transform_6, window_bounds = array<i64: 48, 32>}, {pipeline_mode = #tpu.pipeline_mode<synchronous>, transform_indices = @transform_7, window_bounds = array<i64: 32, 32>}, {pipeline_mode = #tpu.pipeline_mode<synchronous>, transform_indices = @transform_8, window_bounds = array<i64: 1, 32>}, {pipeline_mode = #tpu.pipeline_mode<synchronous>, transform_indices = @transform_9, window_bounds = array<i64: 32, 32>}, {pipeline_mode = #tpu.pipeline_mode<synchronous>, transform_indices = @transform_10, window_bounds = array<i64: 1, 32>}, {pipeline_mode = #tpu.pipeline_mode<synchronous>, transform_indices = @transform_11, window_bounds = array<i64: 1, 4>}]} {
    %c0 = arith.constant 0 : index
    %c0_0 = arith.constant 0 : index
    %0 = vector.load %arg6[%c0, %c0_0] : memref<16x32xf32, #tpu.memory_space<vmem>>, vector<16x32xf32>
    %c0_1 = arith.constant 0 : index
    %c0_2 = arith.constant 0 : index
    %1 = vector.load %arg1[%c0_1, %c0_2] : memref<16x1xf32, #tpu.memory_space<vmem>>, vector<16x1xf32>
    %c0_3 = arith.constant 0 : index
    %c0_4 = arith.constant 0 : index
    %2 = vector.load %arg3[%c0_3, %c0_4] : memref<16x32xf32, #tpu.memory_space<vmem>>, vector<16x32xf32>
    %3 = vector.broadcast %1 : vector<16x1xf32> to vector<16x32xf32>
    %4 = arith.mulf %3, %2 : vector<16x32xf32>
    %c0_5 = arith.constant 0 : index
    %c0_6 = arith.constant 0 : index
    %5 = vector.load %arg2[%c0_5, %c0_6] : memref<16x1xf32, #tpu.memory_space<vmem>>, vector<16x1xf32>
    %6 = vector.broadcast %5 : vector<16x1xf32> to vector<16x32xf32>
    %7 = arith.mulf %6, %0 : vector<16x32xf32>
    %8 = arith.addf %4, %7 : vector<16x32xf32>
    %c0_7 = arith.constant 0 : index
    %c0_8 = arith.constant 0 : index
    %9 = vector.load %arg5[%c0_7, %c0_8] : memref<16x48xbf16, #tpu.memory_space<vmem>>, vector<16x48xbf16>
    %c0_9 = arith.constant 0 : index
    %c0_10 = arith.constant 0 : index
    %10 = vector.load %arg7[%c0_9, %c0_10] : memref<48x32xbf16, #tpu.memory_space<vmem>>, vector<48x32xbf16>
    %cst = arith.constant dense<0.000000e+00> : vector<16x32xf32>
    %11 = tpu.matmul %9, %10, %cst {dimension_numbers = #tpu.dot_dimension_numbers<[1], [0], [0], [1], [0, 0, 1, 1], [], []>} : vector<16x48xbf16>, vector<48x32xbf16>, vector<16x32xf32> -> vector<16x32xf32>
    %c0_11 = arith.constant 0 : index
    %c0_12 = arith.constant 0 : index
    %12 = vector.load %arg4[%c0_11, %c0_12] : memref<16x32xf32, #tpu.memory_space<vmem>>, vector<16x32xf32>
    %13 = arith.addf %8, %12 : vector<16x32xf32>
    %14 = arith.addf %13, %11 : vector<16x32xf32>
    %15 = arith.truncf %14 : vector<16x32xf32> to vector<16x32xbf16>
    %c0_13 = arith.constant 0 : index
    %c0_14 = arith.constant 0 : index
    %16 = vector.load %arg8[%c0_13, %c0_14] : memref<32x32xbf16, #tpu.memory_space<vmem>>, vector<32x32xbf16>
    %cst_15 = arith.constant dense<0.000000e+00> : vector<16x32xf32>
    %17 = tpu.matmul %15, %16, %cst_15 {dimension_numbers = #tpu.dot_dimension_numbers<[1], [0], [0], [1], [0, 0, 1, 1], [], []>} : vector<16x32xbf16>, vector<32x32xbf16>, vector<16x32xf32> -> vector<16x32xf32>
    %c0_16 = arith.constant 0 : index
    %c0_17 = arith.constant 0 : index
    %18 = vector.load %arg9[%c0_16, %c0_17] : memref<1x32xf32, #tpu.memory_space<vmem>>, vector<1x32xf32>
    %19 = vector.broadcast %18 : vector<1x32xf32> to vector<16x32xf32>
    %20 = arith.addf %17, %19 : vector<16x32xf32>
    %cst_18 = arith.constant 0.000000e+00 : f32
    %21 = vector.broadcast %cst_18 : f32 to vector<16x32xf32>
    %22 = arith.maximumf %20, %21 : vector<16x32xf32>
    %23 = arith.truncf %22 : vector<16x32xf32> to vector<16x32xbf16>
    %c0_19 = arith.constant 0 : index
    %c0_20 = arith.constant 0 : index
    %24 = vector.load %arg10[%c0_19, %c0_20] : memref<32x32xbf16, #tpu.memory_space<vmem>>, vector<32x32xbf16>
    %cst_21 = arith.constant dense<0.000000e+00> : vector<16x32xf32>
    %25 = tpu.matmul %23, %24, %cst_21 {dimension_numbers = #tpu.dot_dimension_numbers<[1], [0], [0], [1], [0, 0, 1, 1], [], []>} : vector<16x32xbf16>, vector<32x32xbf16>, vector<16x32xf32> -> vector<16x32xf32>
    %c0_22 = arith.constant 0 : index
    %c0_23 = arith.constant 0 : index
    %26 = vector.load %arg11[%c0_22, %c0_23] : memref<1x32xf32, #tpu.memory_space<vmem>>, vector<1x32xf32>
    %27 = vector.broadcast %26 : vector<1x32xf32> to vector<16x32xf32>
    %28 = arith.addf %25, %27 : vector<16x32xf32>
    %29 = arith.subf %28, %0 : vector<16x32xf32>
    %30 = math.absf %29 : vector<16x32xf32>
    %31 = vector.extract_strided_slice %30 {offsets = [0, 0], sizes = [8, 32], strides = [1, 1]} : vector<16x32xf32> to vector<8x32xf32>
    %32 = vector.shape_cast %31 : vector<8x32xf32> to vector<1x8x32xf32>
    %cst_24 = arith.constant dense<0.000000e+00> : vector<1xf32>
    %33 = vector.multi_reduction <add>, %32, %cst_24 [1, 2] : vector<1x8x32xf32> to vector<1xf32>
    %34 = vector.shape_cast %33 : vector<1xf32> to vector<1x1x1xf32>
    %35 = vector.extract %34[0, 0, 0] : f32 from vector<1x1x1xf32>
    %cst_25 = arith.constant 2.560000e+02 : f32
    %36 = arith.divf %35, %cst_25 : f32
    %37 = vector.extract_strided_slice %28 {offsets = [0, 0], sizes = [8, 32], strides = [1, 1]} : vector<16x32xf32> to vector<8x32xf32>
    %38 = vector.extract_strided_slice %0 {offsets = [0, 0], sizes = [8, 32], strides = [1, 1]} : vector<16x32xf32> to vector<8x32xf32>
    %39 = vector.extract_strided_slice %37 {offsets = [1, 0], sizes = [7, 32], strides = [1, 1]} : vector<8x32xf32> to vector<7x32xf32>
    %40 = vector.extract_strided_slice %37 {offsets = [0, 0], sizes = [7, 32], strides = [1, 1]} : vector<8x32xf32> to vector<7x32xf32>
    %41 = arith.subf %39, %40 : vector<7x32xf32>
    %42 = vector.extract_strided_slice %38 {offsets = [1, 0], sizes = [7, 32], strides = [1, 1]} : vector<8x32xf32> to vector<7x32xf32>
    %43 = vector.extract_strided_slice %38 {offsets = [0, 0], sizes = [7, 32], strides = [1, 1]} : vector<8x32xf32> to vector<7x32xf32>
    %44 = arith.subf %42, %43 : vector<7x32xf32>
    %45 = arith.subf %41, %44 : vector<7x32xf32>
    %46 = math.absf %45 : vector<7x32xf32>
    %47 = vector.shape_cast %46 : vector<7x32xf32> to vector<1x7x32xf32>
    %cst_26 = arith.constant dense<0.000000e+00> : vector<1xf32>
    %48 = vector.multi_reduction <add>, %47, %cst_26 [1, 2] : vector<1x7x32xf32> to vector<1xf32>
    %49 = vector.shape_cast %48 : vector<1xf32> to vector<1x1x1xf32>
    %50 = vector.extract %49[0, 0, 0] : f32 from vector<1x1x1xf32>
    %cst_27 = arith.constant 2.240000e+02 : f32
    %51 = arith.divf %50, %cst_27 : f32
    %52 = vector.broadcast %36 : f32 to vector<1x1xf32>
    %c0_28 = arith.constant 0 : index
    %c0_29 = arith.constant 0 : index
    %53 = vector.load %arg12[%c0_28, %c0_29] : memref<1x4xf32, #tpu.memory_space<vmem>>, vector<1x1xf32>
    tpu.vector_store %arg12[%c0_28, %c0_29], %52 {strides = array<i32>} : memref<1x4xf32, #tpu.memory_space<vmem>>, vector<1x1xf32>,
    %54 = vector.broadcast %51 : f32 to vector<1x1xf32>
    %c0_30 = arith.constant 0 : index
    %c2 = arith.constant 2 : index
    %55 = vector.load %arg12[%c0_30, %c2] : memref<1x4xf32, #tpu.memory_space<vmem>>, vector<1x1xf32>
    tpu.vector_store %arg12[%c0_30, %c2], %54 {strides = array<i32>} : memref<1x4xf32, #tpu.memory_space<vmem>>, vector<1x1xf32>,
    %56 = vector.extract_strided_slice %30 {offsets = [8, 0], sizes = [8, 32], strides = [1, 1]} : vector<16x32xf32> to vector<8x32xf32>
    %57 = vector.shape_cast %56 : vector<8x32xf32> to vector<1x8x32xf32>
    %cst_31 = arith.constant dense<0.000000e+00> : vector<1xf32>
    %58 = vector.multi_reduction <add>, %57, %cst_31 [1, 2] : vector<1x8x32xf32> to vector<1xf32>
    %59 = vector.shape_cast %58 : vector<1xf32> to vector<1x1x1xf32>
    %60 = vector.extract %59[0, 0, 0] : f32 from vector<1x1x1xf32>
    %cst_32 = arith.constant 2.560000e+02 : f32
    %61 = arith.divf %60, %cst_32 : f32
    %62 = vector.extract_strided_slice %28 {offsets = [8, 0], sizes = [8, 32], strides = [1, 1]} : vector<16x32xf32> to vector<8x32xf32>
    %63 = vector.extract_strided_slice %0 {offsets = [8, 0], sizes = [8, 32], strides = [1, 1]} : vector<16x32xf32> to vector<8x32xf32>
    %64 = vector.extract_strided_slice %62 {offsets = [1, 0], sizes = [7, 32], strides = [1, 1]} : vector<8x32xf32> to vector<7x32xf32>
    %65 = vector.extract_strided_slice %62 {offsets = [0, 0], sizes = [7, 32], strides = [1, 1]} : vector<8x32xf32> to vector<7x32xf32>
    %66 = arith.subf %64, %65 : vector<7x32xf32>
    %67 = vector.extract_strided_slice %63 {offsets = [1, 0], sizes = [7, 32], strides = [1, 1]} : vector<8x32xf32> to vector<7x32xf32>
    %68 = vector.extract_strided_slice %63 {offsets = [0, 0], sizes = [7, 32], strides = [1, 1]} : vector<8x32xf32> to vector<7x32xf32>
    %69 = arith.subf %67, %68 : vector<7x32xf32>
    %70 = arith.subf %66, %69 : vector<7x32xf32>
    %71 = math.absf %70 : vector<7x32xf32>
    %72 = vector.shape_cast %71 : vector<7x32xf32> to vector<1x7x32xf32>
    %cst_33 = arith.constant dense<0.000000e+00> : vector<1xf32>
    %73 = vector.multi_reduction <add>, %72, %cst_33 [1, 2] : vector<1x7x32xf32> to vector<1xf32>
    %74 = vector.shape_cast %73 : vector<1xf32> to vector<1x1x1xf32>
    %75 = vector.extract %74[0, 0, 0] : f32 from vector<1x1x1xf32>
    %cst_34 = arith.constant 2.240000e+02 : f32
    %76 = arith.divf %75, %cst_34 : f32
    %77 = vector.broadcast %61 : f32 to vector<1x1xf32>
    %c0_35 = arith.constant 0 : index
    %c1 = arith.constant 1 : index
    %78 = vector.load %arg12[%c0_35, %c1] : memref<1x4xf32, #tpu.memory_space<vmem>>, vector<1x1xf32>
    tpu.vector_store %arg12[%c0_35, %c1], %77 {strides = array<i32>} : memref<1x4xf32, #tpu.memory_space<vmem>>, vector<1x1xf32>,
    %79 = vector.broadcast %76 : f32 to vector<1x1xf32>
    %c0_36 = arith.constant 0 : index
    %c3 = arith.constant 3 : index
    %80 = vector.load %arg12[%c0_36, %c3] : memref<1x4xf32, #tpu.memory_space<vmem>>, vector<1x1xf32>
    tpu.vector_store %arg12[%c0_36, %c3], %79 {strides = array<i32>} : memref<1x4xf32, #tpu.memory_space<vmem>>, vector<1x1xf32>,
    return
  }
  func.func @transform_0(%arg0: i32) -> (i32, i32) {
    %c0_i32 = arith.constant 0 : i32
    %c0_i32_0 = arith.constant 0 : i32
    %c0_i32_1 = arith.constant 0 : i32
    return %c0_i32, %c0_i32_0 : i32, i32
  }
  func.func @transform_1(%arg0: i32) -> (i32, i32) {
    %c0_i32 = arith.constant 0 : i32
    %c0_i32_0 = arith.constant 0 : i32
    %c0_i32_1 = arith.constant 0 : i32
    return %c0_i32, %c0_i32_0 : i32, i32
  }
  func.func @transform_2(%arg0: i32) -> (i32, i32) {
    %c0_i32 = arith.constant 0 : i32
    %c0_i32_0 = arith.constant 0 : i32
    %c0_i32_1 = arith.constant 0 : i32
    return %c0_i32, %c0_i32_0 : i32, i32
  }
  func.func @transform_3(%arg0: i32) -> (i32, i32) {
    %c0_i32 = arith.constant 0 : i32
    %c0_i32_0 = arith.constant 0 : i32
    %c0_i32_1 = arith.constant 0 : i32
    return %c0_i32, %c0_i32_0 : i32, i32
  }
  func.func @transform_4(%arg0: i32) -> (i32, i32) {
    %c0_i32 = arith.constant 0 : i32
    %c0_i32_0 = arith.constant 0 : i32
    %c0_i32_1 = arith.constant 0 : i32
    return %c0_i32, %c0_i32_0 : i32, i32
  }
  func.func @transform_5(%arg0: i32) -> (i32, i32) {
    %c0_i32 = arith.constant 0 : i32
    %c0_i32_0 = arith.constant 0 : i32
    %c0_i32_1 = arith.constant 0 : i32
    return %c0_i32, %c0_i32_0 : i32, i32
  }
  func.func @transform_6(%arg0: i32) -> (i32, i32) {
    %c0_i32 = arith.constant 0 : i32
    %c0_i32_0 = arith.constant 0 : i32
    %c0_i32_1 = arith.constant 0 : i32
    return %c0_i32, %c0_i32_0 : i32, i32
  }
  func.func @transform_7(%arg0: i32) -> (i32, i32) {
    %c0_i32 = arith.constant 0 : i32
    %c0_i32_0 = arith.constant 0 : i32
    %c0_i32_1 = arith.constant 0 : i32
    return %c0_i32, %c0_i32_0 : i32, i32
  }
  func.func @transform_8(%arg0: i32) -> (i32, i32) {
    %c0_i32 = arith.constant 0 : i32
    %c0_i32_0 = arith.constant 0 : i32
    %c0_i32_1 = arith.constant 0 : i32
    return %c0_i32, %c0_i32_0 : i32, i32
  }
  func.func @transform_9(%arg0: i32) -> (i32, i32) {
    %c0_i32 = arith.constant 0 : i32
    %c0_i32_0 = arith.constant 0 : i32
    %c0_i32_1 = arith.constant 0 : i32
    return %c0_i32, %c0_i32_0 : i32, i32
  }
  func.func @transform_10(%arg0: i32) -> (i32, i32) {
    %c0_i32 = arith.constant 0 : i32
    %c0_i32_0 = arith.constant 0 : i32
    %c0_i32_1 = arith.constant 0 : i32
    return %c0_i32, %c0_i32_0 : i32, i32
  }
  func.func @transform_11(%arg0: i32) -> (i32, i32) {
    %c0_i32 = arith.constant 0 : i32
    %c0_i32_0 = arith.constant 0 : i32
    %c0_i32_1 = arith.constant 0 : i32
    return %c0_i32, %c0_i32_0 : i32, i32
  }
}

</mosaic_0001>

<llo_original>
// kernel: tpu_custom_call.1
$region0: #{tpu_custom_call.1}
  #allocation0 [shape = 'u32[]', space=smem, size = 0x4, offset = 0x4, fixed_abs, tag = 'smem constant byte address 0x4 - core index']
  #allocation1 [shape = 'u32[144,128]{1,0:T(1,128)}', space=vmem, size = 0x12000, scoped, tag = 'internal scratch']
  %s0 = inlined_call_operand.vmem [shape: f32[16,1], index: 0, kind: input, shape index: {}]
  %s1 = inlined_call_operand.vmem [shape: f32[16,1], index: 1, kind: input, shape index: {}]
  %s2 = inlined_call_operand.vmem [shape: f32[16,32], index: 2, kind: input, shape index: {}]
  %s3 = inlined_call_operand.vmem [shape: f32[16,32], index: 3, kind: input, shape index: {}]
  %s4 = inlined_call_operand.hbm [shape: bf16[16,48], index: 4, kind: input, shape index: {}]
  %s5 = inlined_call_operand.vmem [shape: f32[16,32], index: 5, kind: input, shape index: {}]
  %s6 = inlined_call_operand.vmem [shape: bf16[48,32], index: 6, kind: input, shape index: {}]
  %s7 = inlined_call_operand.vmem [shape: bf16[32,32], index: 7, kind: input, shape index: {}]
  %s8 = inlined_call_operand.vmem [shape: f32[1,32], index: 8, kind: input, shape index: {}]
  %s9 = inlined_call_operand.vmem [shape: bf16[32,32], index: 9, kind: input, shape index: {}]
  %s10 = inlined_call_operand.vmem [shape: f32[1,32], index: 10, kind: input, shape index: {}]
  %s11 = inlined_call_operand.hbm [shape: f32[1,4], index: 11, kind: output, shape index: {}]
  %s12 = sld [smem:[#allocation0]]
  $region58: #{tpu_custom_call.1} parent=0
    _
  %s14 = ssub.s32 1, %s12
  %s15 = scalar_select 0, %s14, %s12
  $region1: #{tpu_custom_call.1} parent=0
    #allocation2 [shape = 'u8[4096]{0}', space=vmem, size = 0x1000, scoped, tag = 'input window, operand 4, single buffered']
    #allocation3 [shape = 's32[1]{0}', space=sflag, size = 0x4, scoped, tag = 'scoped memory for tpu_custom_call.1']
    #allocation4 [shape = 's32[1]{0}', space=sflag, size = 0x4, scoped, tag = 'scoped memory for tpu_custom_call.1']
    #allocation5 [shape = 'u8[512]{0}', space=vmem, size = 0x400, scoped, tag = 'output window, operand 0, single buffered']
    %16 = vsyncpa [#allocation3], 0
    %17 = vsyncpa [#allocation4], 0
    // Predicated region
    $region2: #{tpu_custom_call.1} parent=1 // pred_check
      _
    $region3: #{tpu_custom_call.1} parent=1 // pred_check_branch
      %19 = sbr.rel (0) target = $region5
    $region4: #{tpu_custom_call.1} parent=1 // pred_region
      _
    $region5: #{tpu_custom_call.1} parent=1 // pred_fallthru
      _
    // Predicated region
    $region6: #{tpu_custom_call.1} parent=1 // pred_check
      _
    $region7: #{tpu_custom_call.1} parent=1 // pred_check_branch
      %21 = sbr.rel (0) target = $region9
    $region8: #{tpu_custom_call.1} parent=1 // pred_region
      _
    $region9: #{tpu_custom_call.1} parent=1 // pred_fallthru
      _
    // Predicated region
    $region10: #{tpu_custom_call.1} parent=1 // pred_check
      _
    $region11: #{tpu_custom_call.1} parent=1 // pred_check_branch
      %23 = sbr.rel (0) target = $region13
    $region12: #{tpu_custom_call.1} parent=1 // pred_region
      _
    $region13: #{tpu_custom_call.1} parent=1 // pred_fallthru
      _
    // Predicated region
    $region14: #{tpu_custom_call.1} parent=1 // pred_check
      _
    $region15: #{tpu_custom_call.1} parent=1 // pred_check_branch
      %25 = sbr.rel (0) target = $region17
    $region16: #{tpu_custom_call.1} parent=1 // pred_region
      _
    $region17: #{tpu_custom_call.1} parent=1 // pred_fallthru
      _
    // Predicated region
    $region18: #{tpu_custom_call.1} parent=1 // pred_check
      _
    $region19: #{tpu_custom_call.1} parent=1 // pred_check_branch
      %27 = sbr.rel (0) target = $region21
    $region20: #{tpu_custom_call.1} parent=1 // pred_region
      %s29 = ssub.s32 128, 128
      %30 = vsyncadd [#allocation3], %s29
      %s31 = sshll.u32 [#allocation2], 4
      %s32 = int_to_ptr.vmem [resolvable:$true] %s31
      %37 = dma.hbm_to_vmem [thread:$0]  %s4, 128, %s32, [#allocation3], 64, 64, 4
    $region21: #{tpu_custom_call.1} parent=1 // pred_fallthru
      _
    // Predicated region
    $region22: #{tpu_custom_call.1} parent=1 // pred_check
      _
    $region23: #{tpu_custom_call.1} parent=1 // pred_check_branch
      %39 = sbr.rel (0) target = $region25
    $region24: #{tpu_custom_call.1} parent=1 // pred_region
      _
    $region25: #{tpu_custom_call.1} parent=1 // pred_fallthru
      _
    // Predicated region
    $region26: #{tpu_custom_call.1} parent=1 // pred_check
      _
    $region27: #{tpu_custom_call.1} parent=1 // pred_check_branch
      %41 = sbr.rel (0) target = $region29
    $region28: #{tpu_custom_call.1} parent=1 // pred_region
      _
    $region29: #{tpu_custom_call.1} parent=1 // pred_fallthru
      _
    // Predicated region
    $region30: #{tpu_custom_call.1} parent=1 // pred_check
      _
    $region31: #{tpu_custom_call.1} parent=1 // pred_check_branch
      %43 = sbr.rel (0) target = $region33
    $region32: #{tpu_custom_call.1} parent=1 // pred_region
      _
    $region33: #{tpu_custom_call.1} parent=1 // pred_fallthru
      _
    // Predicated region
    $region34: #{tpu_custom_call.1} parent=1 // pred_check
      _
    $region35: #{tpu_custom_call.1} parent=1 // pred_check_branch
      %45 = sbr.rel (0) target = $region37
    $region36: #{tpu_custom_call.1} parent=1 // pred_region
      _
    $region37: #{tpu_custom_call.1} parent=1 // pred_fallthru
      _
    // Predicated region
    $region38: #{tpu_custom_call.1} parent=1 // pred_check
      _
    $region39: #{tpu_custom_call.1} parent=1 // pred_check_branch
      %47 = sbr.rel (0) target = $region41
    $region40: #{tpu_custom_call.1} parent=1 // pred_region
      _
    $region41: #{tpu_custom_call.1} parent=1 // pred_fallthru
      _
    // Predicated region
    $region42: #{tpu_custom_call.1} parent=1 // pred_check
      _
    $region43: #{tpu_custom_call.1} parent=1 // pred_check_branch
      %49 = sbr.rel (0) target = $region45
    $region44: #{tpu_custom_call.1} parent=1 // pred_region
      _
    $region45: #{tpu_custom_call.1} parent=1 // pred_fallthru
      _
    // Predicated region
    $region46: #{tpu_custom_call.1} parent=1 // pred_check
      _
    $region47: #{tpu_custom_call.1} parent=1 // pred_check_branch
      %51 = sbr.rel (0) target = $region49
    $region48: #{tpu_custom_call.1} parent=1 // pred_region
      %52 = dma.done [#allocation3], 128
    $region49: #{tpu_custom_call.1} parent=1 // pred_fallthru
      _
    %v54 = vld [vmem:[%s5] sm:$0xff]
    %v55 = vld [vmem:[%s5 + $0x8] sm:$0xff]
    %v56 = vld [vmem:[%s0] sm:$0xff]
    %v57 = vld [vmem:[%s0 + $0x8] sm:$0xff]
    %v58 = vld [vmem:[%s2] sm:$0xff]
    %v59 = vld [vmem:[%s2 + $0x8] sm:$0xff]
    %61 = vset.pattern.permute.xlu0 0
    %62 = vperm.xlu0 %61, %v56
    %v63 = vpop.permute.xlu0 %62
    %66 = vset.pattern.permute.xlu0 0
    %67 = vperm.xlu0 %66, %v57
    %v68 = vpop.permute.xlu0 %67
    %v70 = vmul.f32 %v63, %v58
    %v71 = vmul.f32 %v68, %v59
    %v72 = vld [vmem:[%s1] sm:$0xff]
    %v73 = vld [vmem:[%s1 + $0x8] sm:$0xff]
    %75 = vset.pattern.permute.xlu0 0
    %76 = vperm.xlu0 %75, %v72
    %v77 = vpop.permute.xlu0 %76
    %80 = vset.pattern.permute.xlu0 0
    %81 = vperm.xlu0 %80, %v73
    %v82 = vpop.permute.xlu0 %81
    %v84 = vmul.f32 %v77, %v54
    %v85 = vmul.f32 %v82, %v55
    %v86 = vadd.f32 %v70, %v84
    %v87 = vadd.f32 %v71, %v85
    %v88 = vld [vmem:[#allocation2] sm:$0xf]
    %v89 = vld [vmem:[#allocation2 + $0x4] sm:$0xf]
    %v90 = vld [vmem:[%s6] sm:$0xf]
    %v91 = vld [vmem:[%s6 + $0x4] sm:$0xf]
    %v92 = vld [vmem:[%s6 + $0x8] sm:$0xf]
    %v93 = vld [vmem:[%s6 + $0xc] sm:$0xf]
    %v94 = vld [vmem:[%s6 + $0x10] sm:$0xf]
    %v95 = vld [vmem:[%s6 + $0x14] sm:$0xf]
    %v98 = vunpack.c.l.b16 %v88
    %v99 = vunpack.c.l.b16 %v89
    %v100 = vpack.c.b16 %v99, %v98
    %v107 = vunpack.c.l.b16 %v90
    %v108 = vunpack.c.l.b16 %v91
    %v109 = vunpack.c.l.b16 %v92
    %v110 = vunpack.c.l.b16 %v93
    %v111 = vunpack.c.l.b16 %v94
    %v112 = vunpack.c.l.b16 %v95
    %v113 = vpack.c.b16 %v108, %v107
    %v114 = vpack.c.b16 %v110, %v109
    %v115 = vpack.c.b16 %v112, %v111
    %vm119 = vcmask 392192
    %v121 = vsel %vm119, %v100, 0
    %123 = vmatprep.subr.bf16.mxu0 0
    %124 = vmatpush1.bf16.msra.mxu0 %v113
    %125 = vmatprep.subr.bf16.mxu0 0
    %126 = vmatpush1.bf16.msra.mxu0 %v114
    %127 = vmatprep.subr.bf16.mxu0 0
    %128 = vmatpush1.bf16.msra.mxu0 %v115
    %129 = vmatprep.subr.bf16.mxu0 0
    %130 = vmatpush1.bf16.msra.mxu0 0
    %131 = vmatprep.subr.bf16.mxu0 0
    %132 = vmatpush1.bf16.msra.mxu0 0
    %133 = vmatprep.subr.bf16.mxu0 0
    %134 = vmatpush1.bf16.msra.mxu0 0
    %135 = vmatprep.subr.bf16.mxu0 0
    %136 = vmatpush1.bf16.msra.mxu0 0
    %137 = vmatprep.subr.bf16.mxu0 0
    %138 = vmatpush1.bf16.msra.mxu0 0
    %139 = vmatprep.subr.bf16.mxu0 0
    %140 = vmatpush1.bf16.msra.mxu0 0
    %141 = vmatprep.subr.bf16.mxu0 0
    %142 = vmatpush1.bf16.msra.mxu0 0
    %143 = vmatprep.subr.bf16.mxu0 0
    %144 = vmatpush1.bf16.msra.mxu0 0
    %145 = vmatprep.subr.bf16.mxu0 0
    %146 = vmatpush1.bf16.msra.mxu0 0
    %147 = vmatprep.subr.bf16.mxu0 0
    %148 = vmatpush1.bf16.msra.mxu0 0
    %149 = vmatprep.subr.bf16.mxu0 0
    %150 = vmatpush1.bf16.msra.mxu0 0
    %151 = vmatprep.subr.bf16.mxu0 0
    %152 = vmatpush1.bf16.msra.mxu0 0
    %153 = vmatprep.subr.bf16.mxu0 0
    %154 = vmatpush1.bf16.msra.mxu0 0
    %155 = vmatprep.mubr.bf16.mxu0 0
    %156 = vmatmul.mubr.bf16.gmra.mrb[0].mxu0 %v121
    %v157 = vpop.f32.mrb[0].mxu0
    %v158 = vadd.f32 0.0, %v157
    %v159 = vpop.f32.mrb[0].mxu0
    %v160 = vpop.f32.mrb[0].mxu0
    %v161 = vadd.f32 0.0, %v160
    %v162 = vpop.f32.mrb[0].mxu0
    %163 = vdwg.mxu0
    %v164 = vld [vmem:[%s3] sm:$0xff]
    %v165 = vld [vmem:[%s3 + $0x8] sm:$0xff]
    %v166 = vadd.f32 %v86, %v164
    %v167 = vadd.f32 %v87, %v165
    %v168 = vadd.f32 %v166, %v158
    %v169 = vadd.f32 %v167, %v161
    %v170 = vpack.c.bf16 %v169, %v168
    %v171 = vld [vmem:[%s7] sm:$0xf]
    %v172 = vld [vmem:[%s7 + $0x4] sm:$0xf]
    %v173 = vld [vmem:[%s7 + $0x8] sm:$0xf]
    %v174 = vld [vmem:[%s7 + $0xc] sm:$0xf]
    %v175 = vld [vmem:[%s8] sm:$0x1]
    %v177 = vlaneseq
    %v178 = vshrl.u32 %v177, 7
    %v179 = vsub.s32 0, %v178
    %v180 = vrot.slane %v175, %v179
    %v186 = vunpack.c.l.b16 %v171
    %v187 = vunpack.c.l.b16 %v172
    %v188 = vunpack.c.l.b16 %v173
    %v189 = vunpack.c.l.b16 %v174
    %v190 = vpack.c.b16 %v187, %v186
    %v191 = vpack.c.b16 %v189, %v188
    %vm194 = vcmask 261120
    %v196 = vsel %vm194, %v170, 0
    %198 = vmatprep.subr.bf16.mxu0 0
    %199 = vmatpush1.bf16.msra.mxu0 %v190
    %200 = vmatprep.subr.bf16.mxu0 0
    %201 = vmatpush1.bf16.msra.mxu0 %v191
    %202 = vmatprep.subr.bf16.mxu0 0
    %203 = vmatpush1.bf16.msra.mxu0 0
    %204 = vmatprep.subr.bf16.mxu0 0
    %205 = vmatpush1.bf16.msra.mxu0 0
    %206 = vmatprep.subr.bf16.mxu0 0
    %207 = vmatpush1.bf16.msra.mxu0 0
    %208 = vmatprep.subr.bf16.mxu0 0
    %209 = vmatpush1.bf16.msra.mxu0 0
    %210 = vmatprep.subr.bf16.mxu0 0
    %211 = vmatpush1.bf16.msra.mxu0 0
    %212 = vmatprep.subr.bf16.mxu0 0
    %213 = vmatpush1.bf16.msra.mxu0 0
    %214 = vmatprep.subr.bf16.mxu0 0
    %215 = vmatpush1.bf16.msra.mxu0 0
    %216 = vmatprep.subr.bf16.mxu0 0
    %217 = vmatpush1.bf16.msra.mxu0 0
    %218 = vmatprep.subr.bf16.mxu0 0
    %219 = vmatpush1.bf16.msra.mxu0 0
    %220 = vmatprep.subr.bf16.mxu0 0
    %221 = vmatpush1.bf16.msra.mxu0 0
    %222 = vmatprep.subr.bf16.mxu0 0
    %223 = vmatpush1.bf16.msra.mxu0 0
    %224 = vmatprep.subr.bf16.mxu0 0
    %225 = vmatpush1.bf16.msra.mxu0 0
    %226 = vmatprep.subr.bf16.mxu0 0
    %227 = vmatpush1.bf16.msra.mxu0 0
    %228 = vmatprep.subr.bf16.mxu0 0
    %229 = vmatpush1.bf16.msra.mxu0 0
    %230 = vmatprep.mubr.bf16.mxu0 0
    %231 = vmatmul.mubr.bf16.gmra.mrb[0].mxu0 %v196
    %v232 = vpop.f32.mrb[0].mxu0
    %v233 = vadd.f32 %v180, %v232
    %v234 = vpop.f32.mrb[0].mxu0
    %v235 = vpop.f32.mrb[0].mxu0
    %v236 = vadd.f32 %v180, %v235
    %v237 = vpop.f32.mrb[0].mxu0
    %238 = vdwg.mxu0
    %v239 = vmax.f32 %v233, 0.0
    %v240 = vmax.f32 %v236, 0.0
    %v241 = vpack.c.bf16 %v240, %v239
    %v242 = vld [vmem:[%s9] sm:$0xf]
    %v243 = vld [vmem:[%s9 + $0x4] sm:$0xf]
    %v244 = vld [vmem:[%s9 + $0x8] sm:$0xf]
    %v245 = vld [vmem:[%s9 + $0xc] sm:$0xf]
    %v246 = vld [vmem:[%s10] sm:$0x1]
    %v248 = vlaneseq
    %v249 = vshrl.u32 %v248, 7
    %v250 = vsub.s32 0, %v249
    %v251 = vrot.slane %v246, %v250
    %v257 = vunpack.c.l.b16 %v242
    %v258 = vunpack.c.l.b16 %v243
    %v259 = vunpack.c.l.b16 %v244
    %v260 = vunpack.c.l.b16 %v245
    %v261 = vpack.c.b16 %v258, %v257
    %v262 = vpack.c.b16 %v260, %v259
    %v266 = vsel %vm194, %v241, 0
    %268 = vmatprep.subr.bf16.mxu0 0
    %269 = vmatpush1.bf16.msra.mxu0 %v261
    %270 = vmatprep.subr.bf16.mxu0 0
    %271 = vmatpush1.bf16.msra.mxu0 %v262
    %272 = vmatprep.subr.bf16.mxu0 0
    %273 = vmatpush1.bf16.msra.mxu0 0
    %274 = vmatprep.subr.bf16.mxu0 0
    %275 = vmatpush1.bf16.msra.mxu0 0
    %276 = vmatprep.subr.bf16.mxu0 0
    %277 = vmatpush1.bf16.msra.mxu0 0
    %278 = vmatprep.subr.bf16.mxu0 0
    %279 = vmatpush1.bf16.msra.mxu0 0
    %280 = vmatprep.subr.bf16.mxu0 0
    %281 = vmatpush1.bf16.msra.mxu0 0
    %282 = vmatprep.subr.bf16.mxu0 0
    %283 = vmatpush1.bf16.msra.mxu0 0
    %284 = vmatprep.subr.bf16.mxu0 0
    %285 = vmatpush1.bf16.msra.mxu0 0
    %286 = vmatprep.subr.bf16.mxu0 0
    %287 = vmatpush1.bf16.msra.mxu0 0
    %288 = vmatprep.subr.bf16.mxu0 0
    %289 = vmatpush1.bf16.msra.mxu0 0
    %290 = vmatprep.subr.bf16.mxu0 0
    %291 = vmatpush1.bf16.msra.mxu0 0
    %292 = vmatprep.subr.bf16.mxu0 0
    %293 = vmatpush1.bf16.msra.mxu0 0
    %294 = vmatprep.subr.bf16.mxu0 0
    %295 = vmatpush1.bf16.msra.mxu0 0
    %296 = vmatprep.subr.bf16.mxu0 0
    %297 = vmatpush1.bf16.msra.mxu0 0
    %298 = vmatprep.subr.bf16.mxu0 0
    %299 = vmatpush1.bf16.msra.mxu0 0
    %300 = vmatprep.mubr.bf16.mxu0 0
    %301 = vmatmul.mubr.bf16.gmra.mrb[0].mxu0 %v266
    %v302 = vpop.f32.mrb[0].mxu0
    %v303 = vadd.f32 %v251, %v302
    %v304 = vpop.f32.mrb[0].mxu0
    %v305 = vpop.f32.mrb[0].mxu0
    %v306 = vadd.f32 %v251, %v305
    %v307 = vpop.f32.mrb[0].mxu0
    %308 = vdwg.mxu0
    %v309 = vsub.f32 %v303, %v54
    %v310 = vsub.f32 %v306, %v55
    %v311 = vand.u32 2147483647, %v309
    %v312 = vand.u32 2147483647, %v310
    %v313 = vsel %vm194, %v311, 0.0
    %314 = vadd.xlane.f32.xlu0 %v313
    %v315 = vpop.xlane.xlu0 %314
    %v316 = vrot.slane %v315, 4
    %v317 = vadd.f32 %v315, %v316
    %v318 = vrot.slane %v317, 2
    %v319 = vadd.f32 %v317, %v318
    %v320 = vrot.slane %v319, 1
    %v321 = vadd.f32 %v319, %v320
    %s322 = vtos %v321
    %v323 = vrcp.pop 256.0
    %s324 = vtos %v323
    %s325 = smul.f32 %s322, %s324
    %v327 = vrot.slane %v303, 7
    %v329 = vsub.f32 %v303, %v327
    %v331 = vrot.slane %v54, 7
    %v333 = vsub.f32 %v54, %v331
    %v334 = vsub.f32 %v329, %v333
    %v335 = vand.u32 2147483647, %v334
    %v337 = vrot.slane %v335, 1
    %vm339 = vcmask 260096
    %v340 = vsel %vm339, %v337, 0.0
    %341 = vadd.xlane.f32.xlu0 %v340
    %v342 = vpop.xlane.xlu0 %341
    %v343 = vrot.slane %v342, 4
    %v344 = vadd.f32 %v342, %v343
    %v345 = vrot.slane %v344, 2
    %v346 = vadd.f32 %v344, %v345
    %v347 = vrot.slane %v346, 1
    %v348 = vadd.f32 %v346, %v347
    %s349 = vtos %v348
    %v350 = vrcp.pop 224.0
    %s351 = vtos %v350
    %s352 = smul.f32 %s349, %s351
    %v353 = vstv %s325
    %vm354 = vcmask 0
    %355 = vst.msk [vmem:[#allocation5] sm:$0x1] %vm354, %v353
    %v356 = vstv %s352
    %vm357 = vcmask 16400
    %358 = vst.msk [vmem:[#allocation5] sm:$0x1] %vm357, %v356
    %v359 = vsel %vm194, %v312, 0.0
    %360 = vadd.xlane.f32.xlu0 %v359
    %v361 = vpop.xlane.xlu0 %360
    %v362 = vrot.slane %v361, 4
    %v363 = vadd.f32 %v361, %v362
    %v364 = vrot.slane %v363, 2
    %v365 = vadd.f32 %v363, %v364
    %v366 = vrot.slane %v365, 1
    %v367 = vadd.f32 %v365, %v366
    %s368 = vtos %v367
    %v369 = vrcp.pop 256.0
    %s370 = vtos %v369
    %s371 = smul.f32 %s368, %s370
    %v373 = vrot.slane %v306, 7
    %v375 = vsub.f32 %v306, %v373
    %v377 = vrot.slane %v55, 7
    %v379 = vsub.f32 %v55, %v377
    %v380 = vsub.f32 %v375, %v379
    %v381 = vand.u32 2147483647, %v380
    %v383 = vrot.slane %v381, 1
    %v385 = vsel %vm339, %v383, 0.0
    %386 = vadd.xlane.f32.xlu0 %v385
    %v387 = vpop.xlane.xlu0 %386
    %v388 = vrot.slane %v387, 4
    %v389 = vadd.f32 %v387, %v388
    %v390 = vrot.slane %v389, 2
    %v391 = vadd.f32 %v389, %v390
    %v392 = vrot.slane %v391, 1
    %v393 = vadd.f32 %v391, %v392
    %s394 = vtos %v393
    %v395 = vrcp.pop 224.0
    %s396 = vtos %v395
    %s397 = smul.f32 %s394, %s396
    %v398 = vstv %s371
    %vm399 = vcmask 8200
    %400 = vst.msk [vmem:[#allocation5] sm:$0x1] %vm399, %v398
    %v401 = vstv %s397
    %vm402 = vcmask 24600
    %403 = vst.msk [vmem:[#allocation5] sm:$0x1] %vm402, %v401
    // Predicated region
    $region50: #{tpu_custom_call.1} parent=1 // pred_check
      _
    $region51: #{tpu_custom_call.1} parent=1 // pred_check_branch
      %405 = sbr.rel (0) target = $region53
    $region52: #{tpu_custom_call.1} parent=1 // pred_region
      %s407 = ssub.s32 16, 16
      %408 = vsyncadd [#allocation4], %s407
      %s410 = sshll.u32 [#allocation5], 4
      %s411 = int_to_ptr.vmem [resolvable:$true] %s410
      %413 = dma.vmem_to_hbm [thread:$0]  %s411, 16, %s11, [#allocation4]
    $region53: #{tpu_custom_call.1} parent=1 // pred_fallthru
      _
    // Predicated region
    $region54: #{tpu_custom_call.1} parent=1 // pred_check
      _
    $region55: #{tpu_custom_call.1} parent=1 // pred_check_branch
      %415 = sbr.rel (0) target = $region57
    $region56: #{tpu_custom_call.1} parent=1 // pred_region
      %416 = dma.done [#allocation4], 16
    $region57: #{tpu_custom_call.1} parent=1 // pred_fallthru
      _
    %417 = vsyncpa [#allocation3], 1
    %418 = vsyncpa [#allocation4], 1

</llo_original>
